<compile_context>
chip_gen: v5e
topology: v5e:2x2
jax: 0.10.0
libtpu: 0.0.40
codegen_flags: <defaults>
</compile_context>

<pallas_src>
import functools

import jax
import jax.numpy as jnp
from jax import lax
from jax.experimental import pallas as pl
from jax.experimental.pallas import tpu as pltpu

MARGIN = 0.1      # DynamicTripletLoss(margin=0.1)
_MAX_TILE = 256   # row-tile cap: 256-multiples keep the v6e/v7x 256x256 MXU full


def _pick_tile(b: int, max_tile: int = _MAX_TILE) -> int:
    """Largest row tile <= max_tile that divides B (multiple of 8), else full B."""
    if b <= max_tile:
        return b
    for t in range(max_tile, 7, -8):
        if b % t == 0:
            return t
    return b  # fallback: single full-size tile


def _normalize_diag_kernel(im_ref, rec_ref, imn_ref, recn_ref, d_ref):
    im = im_ref[...]     # (tm, D) float32 row tile
    rec = rec_ref[...]   # (tm, D) float32 row tile
    # F.normalize(x, dim=-1) == x * rsqrt(max(||x||^2, 1e-24)): rsqrt goes to the EUP
    # slot and the two divisions become plain multiplies.
    im_n = im * lax.rsqrt(jnp.maximum(jnp.sum(im * im, axis=-1, keepdims=True), 1e-24))
    rec_n = rec * lax.rsqrt(jnp.maximum(jnp.sum(rec * rec, axis=-1, keepdims=True), 1e-24))
    imn_ref[...] = im_n
    recn_ref[...] = rec_n
    # Direct diagonal of the cosine-distance matrix, O(B*D): d[i] = 1 - im_n[i].rec_n[i]
    d_ref[...] = 1.0 - jnp.sum(im_n * rec_n, axis=-1, keepdims=True)


def _hinge_sum_kernel(imn_ref, recn_ref, di_ref, dj_ref, out_ref, *, margin, mxu_dtype):
    i = pl.program_id(0)
    j = pl.program_id(1)

    @pl.when(jnp.logical_and(i == 0, j == 0))
    def _():
        out_ref[0, 0] = 0.0

    a = imn_ref[...]    # (tm, D) normalized `im` rows, tile i
    b = recn_ref[...]   # (tn, D) normalized `rec` rows, tile j
    if mxu_dtype is not None:        # bf16 MXU operands for large realistic shapes
        a = a.astype(mxu_dtype)
        b = b.astype(mxu_dtype)

    d_i = di_ref[...]   # (tm, 1) f32 diag entries for rows in tile i
    d_j = dj_ref[...]   # (tn, 1) f32 diag entries for rows in tile j

    # scores[r,c] = 1 - im_n[r].rec_n[c];  hinge = max(0, diag - scores + margin)
    #            == max(0, sim + (diag + margin - 1))  -> constants folded into (t,1) bias
    bias_i = d_i + (margin - 1.0)
    bias_j = d_j + (margin - 1.0)

    sim_ij = lax.dot_general(a, b, (((1,), (1,)), ((), ())),
                             preferred_element_type=jnp.float32)    # (tm, tn)
    cost_im = jnp.maximum(0.0, sim_ij + bias_i)                     # d1 hinge

    # cost_rec needs diag[column]; sum it over the TRANSPOSED block so the (t,1) diag
    # vector broadcasts along lanes (no transpose, no eye mask). Diagonal left unmasked
    # here; it is exactly `margin` and is subtracted analytically in the wrapper.
    sim_ji = lax.dot_general(b, a, (((1,), (1,)), ((), ())),
                             preferred_element_type=jnp.float32)    # (tn, tm)
    cost_rec = jnp.maximum(0.0, sim_ji + bias_j)                    # d2 hinge (unmasked)

    out_ref[0, 0] += jnp.sum(cost_im) + jnp.sum(cost_rec)


def dynamic_triplet_loss(im, rec, *, margin=MARGIN, reduction=None, mxu_dtype=None):
    """im, rec: (B, D) float32. Matches DynamicTripletLoss(margin, reduction).forward.

    Set mxu_dtype=jnp.bfloat16 for large realistic B/D (f32 accumulation is kept and
    the diagonal stays f32 via the direct per-row dot in the pre-pass).
    Note: reduction=None divides by (B - 1), undefined for B == 1 (matches reference).
    """
    assert im.ndim == 2 and im.shape == rec.shape
    B, D = im.shape
    tm = _pick_tile(B)
    nt = B // tm

    # Pass 1: rsqrt-normalize rows + cosine-distance diagonal (row-tiled, megacore-parallel).
    im_n, rec_n, diag = pl.pallas_call(
        _normalize_diag_kernel,
        grid=(nt,),
        in_specs=[pl.BlockSpec((tm, D), lambda i: (i, 0)),
                  pl.BlockSpec((tm, D), lambda i: (i, 0))],
        out_specs=[pl.BlockSpec((tm, D), lambda i: (i, 0)),
                   pl.BlockSpec((tm, D), lambda i: (i, 0)),
                   pl.BlockSpec((tm, 1), lambda i: (i, 0))],
        out_shape=[jax.ShapeDtypeStruct((B, D), im.dtype),
                   jax.ShapeDtypeStruct((B, D), rec.dtype),
                   jax.ShapeDtypeStruct((B, 1), jnp.float32)],
        compiler_params=pltpu.CompilerParams(dimension_semantics=("parallel",)),
    )(im, rec)

    # Pass 2: tile the (B, B) score matrix over (row-tile, col-tile); accumulate the
    # hinge sums in an SMEM scalar (arbitrary axes: scalar accumulator is revisited).
    total = pl.pallas_call(
        functools.partial(_hinge_sum_kernel, margin=float(margin), mxu_dtype=mxu_dtype),
        grid=(nt, nt),
        in_specs=[pl.BlockSpec((tm, D), lambda i, j: (i, 0)),   # im_n rows, tile i
                  pl.BlockSpec((tm, D), lambda i, j: (j, 0)),   # rec_n rows, tile j
                  pl.BlockSpec((tm, 1), lambda i, j: (i, 0)),   # diag, tile i
                  pl.BlockSpec((tm, 1), lambda i, j: (j, 0))],  # diag, tile j
        out_specs=pl.BlockSpec((1, 1), lambda i, j: (0, 0),
                               memory_space=pltpu.MemorySpace.SMEM),
        out_shape=jax.ShapeDtypeStruct((1, 1), jnp.float32),
        compiler_params=pltpu.CompilerParams(
            dimension_semantics=("arbitrary", "arbitrary"),
            vmem_limit_bytes=32 * 1024 * 1024),
    )(im_n, rec_n, diag, diag)[0, 0]

    # cost_rec's masked_fill_ diagonal equals max(0, margin) exactly; remove it
    # analytically instead of building an eye mask in-kernel.
    masked_sum = total - B * max(float(margin), 0.0)
    if reduction == "mean":
        return masked_sum / (B * B)
    return masked_sum / (B - 1)


def _reference_loss(im, rec, margin=MARGIN):
    # Pure-JAX reference reproducing the PyTorch semantics, for verification.
    im_n = im / jnp.maximum(jnp.linalg.norm(im, axis=-1, keepdims=True), 1e-12)
    rec_n = rec / jnp.maximum(jnp.linalg.norm(rec, axis=-1, keepdims=True), 1e-12)
    scores = 1.0 - im_n @ rec_n.T
    B = im.shape[0]
    d = jnp.diag(scores)
    cost_im = jnp.maximum(0.0, d[:, None] - scores + margin)
    cost_rec = jnp.maximum(0.0, d[None, :] - scores + margin) * (1.0 - jnp.eye(B))
    return jnp.sum(cost_rec + cost_im) / (B - 1)


if __name__ == "__main__":
    key = jax.random.PRNGKey(0)
    k_im, k_rec = jax.random.split(key)
    B, D = 8, 32  # batch of embeddings, hidden dim
    im = jax.random.normal(k_im, (B, D), dtype=jnp.float32)
    rec = jax.random.normal(k_rec, (B, D), dtype=jnp.float32)

    loss = dynamic_triplet_loss(im, rec)
    jax.block_until_ready(loss)

    ref = _reference_loss(im, rec)
    assert jnp.allclose(loss, ref, rtol=1e-4, atol=1e-4), (loss, ref)

    print("KERNEL_OK")
</pallas_src>

<mosaic_0001>
module attributes {stable_mosaic.version = 11 : i64} {
  func.func @_normalize_diag_kernel(%arg0: i32, %arg1: memref<8x32xf32, #tpu.memory_space<vmem>>, %arg2: memref<8x32xf32, #tpu.memory_space<vmem>>, %arg3: memref<8x32xf32, #tpu.memory_space<vmem>>, %arg4: memref<8x32xf32, #tpu.memory_space<vmem>>, %arg5: memref<8x1xf32, #tpu.memory_space<vmem>>) attributes {dimension_semantics = [#tpu.dimension_semantics<parallel>], iteration_bounds = array<i64: 1>, scalar_prefetch = 0 : i64, scratch_operands = 0 : i64, tpu.core_type = #tpu.core_type<tc>, window_params = [{transform_indices = @transform_0, window_bounds = array<i64: 8, 32>}, {transform_indices = @transform_1, window_bounds = array<i64: 8, 32>}, {transform_indices = @transform_2, window_bounds = array<i64: 8, 32>}, {transform_indices = @transform_3, window_bounds = array<i64: 8, 32>}, {transform_indices = @transform_4, window_bounds = array<i64: 8, 1>}]} {
    %c0 = arith.constant 0 : index
    %c0_0 = arith.constant 0 : index
    %0 = vector.load %arg1[%c0, %c0_0] : memref<8x32xf32, #tpu.memory_space<vmem>>, vector<8x32xf32>
    %c0_1 = arith.constant 0 : index
    %c0_2 = arith.constant 0 : index
    %1 = vector.load %arg2[%c0_1, %c0_2] : memref<8x32xf32, #tpu.memory_space<vmem>>, vector<8x32xf32>
    %2 = arith.mulf %0, %0 : vector<8x32xf32>
    %cst = arith.constant dense<0.000000e+00> : vector<8xf32>
    %3 = vector.multi_reduction <add>, %2, %cst [1] : vector<8x32xf32> to vector<8xf32>
    %4 = vector.shape_cast %3 : vector<8xf32> to vector<8x1xf32>
    %cst_3 = arith.constant 1.000000e-24 : f32
    %5 = vector.broadcast %cst_3 : f32 to vector<8x1xf32>
    %6 = arith.maximumf %4, %5 : vector<8x1xf32>
    %7 = math.rsqrt %6 : vector<8x1xf32>
    %8 = vector.broadcast %7 : vector<8x1xf32> to vector<8x32xf32>
    %9 = arith.mulf %0, %8 : vector<8x32xf32>
    %10 = arith.mulf %1, %1 : vector<8x32xf32>
    %cst_4 = arith.constant dense<0.000000e+00> : vector<8xf32>
    %11 = vector.multi_reduction <add>, %10, %cst_4 [1] : vector<8x32xf32> to vector<8xf32>
    %12 = vector.shape_cast %11 : vector<8xf32> to vector<8x1xf32>
    %cst_5 = arith.constant 1.000000e-24 : f32
    %13 = vector.broadcast %cst_5 : f32 to vector<8x1xf32>
    %14 = arith.maximumf %12, %13 : vector<8x1xf32>
    %15 = math.rsqrt %14 : vector<8x1xf32>
    %16 = vector.broadcast %15 : vector<8x1xf32> to vector<8x32xf32>
    %17 = arith.mulf %1, %16 : vector<8x32xf32>
    %c0_6 = arith.constant 0 : index
    %c0_7 = arith.constant 0 : index
    %18 = vector.load %arg3[%c0_6, %c0_7] : memref<8x32xf32, #tpu.memory_space<vmem>>, vector<8x32xf32>
    tpu.vector_store %arg3[%c0_6, %c0_7], %9 {strides = array<i32>} : memref<8x32xf32, #tpu.memory_space<vmem>>, vector<8x32xf32>,
    %c0_8 = arith.constant 0 : index
    %c0_9 = arith.constant 0 : index
    %19 = vector.load %arg4[%c0_8, %c0_9] : memref<8x32xf32, #tpu.memory_space<vmem>>, vector<8x32xf32>
    tpu.vector_store %arg4[%c0_8, %c0_9], %17 {strides = array<i32>} : memref<8x32xf32, #tpu.memory_space<vmem>>, vector<8x32xf32>,
    %20 = arith.mulf %9, %17 : vector<8x32xf32>
    %cst_10 = arith.constant dense<0.000000e+00> : vector<8xf32>
    %21 = vector.multi_reduction <add>, %20, %cst_10 [1] : vector<8x32xf32> to vector<8xf32>
    %22 = vector.shape_cast %21 : vector<8xf32> to vector<8x1xf32>
    %cst_11 = arith.constant 1.000000e+00 : f32
    %23 = vector.broadcast %cst_11 : f32 to vector<8x1xf32>
    %24 = arith.subf %23, %22 : vector<8x1xf32>
    %c0_12 = arith.constant 0 : index
    %c0_13 = arith.constant 0 : index
    %25 = vector.load %arg5[%c0_12, %c0_13] : memref<8x1xf32, #tpu.memory_space<vmem>>, vector<8x1xf32>
    tpu.vector_store %arg5[%c0_12, %c0_13], %24 {strides = array<i32>} : memref<8x1xf32, #tpu.memory_space<vmem>>, vector<8x1xf32>,
    return
  }
  func.func @transform_0(%arg0: i32) -> (i32, i32) {
    %c0_i32 = arith.constant 0 : i32
    %c0_i32_0 = arith.constant 0 : i32
    return %arg0, %c0_i32 : i32, i32
  }
  func.func @transform_1(%arg0: i32) -> (i32, i32) {
    %c0_i32 = arith.constant 0 : i32
    %c0_i32_0 = arith.constant 0 : i32
    return %arg0, %c0_i32 : i32, i32
  }
  func.func @transform_2(%arg0: i32) -> (i32, i32) {
    %c0_i32 = arith.constant 0 : i32
    %c0_i32_0 = arith.constant 0 : i32
    return %arg0, %c0_i32 : i32, i32
  }
  func.func @transform_3(%arg0: i32) -> (i32, i32) {
    %c0_i32 = arith.constant 0 : i32
    %c0_i32_0 = arith.constant 0 : i32
    return %arg0, %c0_i32 : i32, i32
  }
  func.func @transform_4(%arg0: i32) -> (i32, i32) {
    %c0_i32 = arith.constant 0 : i32
    %c0_i32_0 = arith.constant 0 : i32
    return %arg0, %c0_i32 : i32, i32
  }
}

</mosaic_0001>

<llo_original>
// kernel: tpu_custom_call.1
$region0: #{tpu_custom_call.1}
  #allocation0 [shape = 'u32[]', space=smem, size = 0x4, offset = 0x4, fixed_abs, tag = 'smem constant byte address 0x4 - core index']
  #allocation1 [shape = 'u32[72,128]{1,0:T(1,128)}', space=vmem, size = 0x9000, scoped, tag = 'internal scratch']
  %s0 = inlined_call_operand.hbm [shape: f32[8,32], index: 0, kind: input, shape index: {}]
  %s1 = inlined_call_operand.hbm [shape: f32[8,32], index: 1, kind: input, shape index: {}]
  %s2 = inlined_call_operand.hbm [shape: f32[8,32], index: 2, kind: output, shape index: {0}]
  %s3 = inlined_call_operand.hbm [shape: f32[8,32], index: 3, kind: output, shape index: {1}]
  %s4 = inlined_call_operand.vmem [shape: f32[8,1], index: 4, kind: output, shape index: {2}]
  %5 = xla_tuple %s2, %s3, %s4
  %s6 = sld [smem:[#allocation0]]
  $region42: #{tpu_custom_call.1} parent=0
    _
  %s8 = ssub.s32 1, %s6
  %s9 = scalar_select 0, %s8, %s6
  $region1: #{tpu_custom_call.1} parent=0
    #allocation2 [shape = 'u8[4096]{0}', space=vmem, size = 0x1000, scoped, tag = 'input window, operand 0, single buffered']
    #allocation3 [shape = 's32[1]{0}', space=sflag, size = 0x4, scoped, tag = 'scoped memory for tpu_custom_call.1']
    #allocation4 [shape = 's32[1]{0}', space=sflag, size = 0x4, scoped, tag = 'scoped memory for tpu_custom_call.1']
    #allocation5 [shape = 'u8[4096]{0}', space=vmem, size = 0x1000, scoped, tag = 'input window, operand 1, single buffered']
    #allocation6 [shape = 's32[1]{0}', space=sflag, size = 0x4, scoped, tag = 'scoped memory for tpu_custom_call.1']
    #allocation7 [shape = 'u8[4096]{0}', space=vmem, size = 0x1000, scoped, tag = 'output window, operand 0, single buffered']
    #allocation8 [shape = 'u8[4096]{0}', space=vmem, size = 0x1000, scoped, tag = 'output window, operand 1, single buffered']
    #allocation9 [shape = 's32[1]{0}', space=sflag, size = 0x4, scoped, tag = 'scoped memory for tpu_custom_call.1']
    %10 = vsyncpa [#allocation3], 0
    %11 = vsyncpa [#allocation6], 0
    %12 = vsyncpa [#allocation4], 0
    %13 = vsyncpa [#allocation9], 0
    // Predicated region
    $region2: #{tpu_custom_call.1} parent=1 // pred_check
      _
    $region3: #{tpu_custom_call.1} parent=1 // pred_check_branch
      %15 = sbr.rel (0) target = $region5
    $region4: #{tpu_custom_call.1} parent=1 // pred_region
      %17 = vsyncadd [#allocation3], 0
      %s19 = sshll.u32 %s0, 4
      %s20 = int_to_ptr.hbm [resolvable:$true] %s19
      %s21 = sshll.u32 [#allocation2], 4
      %s22 = int_to_ptr.vmem [resolvable:$true] %s21
      %24 = dma.hbm_to_vmem [thread:$0]  %s20, 128, %s22, [#allocation3]
    $region5: #{tpu_custom_call.1} parent=1 // pred_fallthru
      _
    // Predicated region
    $region6: #{tpu_custom_call.1} parent=1 // pred_check
      _
    $region7: #{tpu_custom_call.1} parent=1 // pred_check_branch
      %26 = sbr.rel (0) target = $region9
    $region8: #{tpu_custom_call.1} parent=1 // pred_region
      %28 = vsyncadd [#allocation6], 0
      %s30 = sshll.u32 %s1, 4
      %s31 = int_to_ptr.hbm [resolvable:$true] %s30
      %s32 = sshll.u32 [#allocation5], 4
      %s33 = int_to_ptr.vmem [resolvable:$true] %s32
      %35 = dma.hbm_to_vmem [thread:$0]  %s31, 128, %s33, [#allocation6]
    $region9: #{tpu_custom_call.1} parent=1 // pred_fallthru
      _
    // Predicated region
    $region10: #{tpu_custom_call.1} parent=1 // pred_check
      _
    $region11: #{tpu_custom_call.1} parent=1 // pred_check_branch
      %37 = sbr.rel (0) target = $region13
    $region12: #{tpu_custom_call.1} parent=1 // pred_region
      %39 = dma.done [#allocation3], 128
    $region13: #{tpu_custom_call.1} parent=1 // pred_fallthru
      _
    // Predicated region
    $region14: #{tpu_custom_call.1} parent=1 // pred_check
      _
    $region15: #{tpu_custom_call.1} parent=1 // pred_check_branch
      %41 = sbr.rel (0) target = $region17
    $region16: #{tpu_custom_call.1} parent=1 // pred_region
      %43 = dma.done [#allocation6], 128
    $region17: #{tpu_custom_call.1} parent=1 // pred_fallthru
      _
    %v44 = vld [vmem:[#allocation2] sm:$0xff]
    %v45 = vld [vmem:[#allocation5] sm:$0xff]
    %v46 = vmul.f32 %v44, %v44
    %vm47 = vcmask 261120
    %v48 = vsel %vm47, %v46, 0.0
    %49 = vadd.xlane.f32.xlu0 %v48
    %v50 = vpop.xlane.xlu0 %49
    %v51 = vmax.f32 %v50, 1e-24
    %v52 = vrsqrt.pop %v51
    %v53 = vmul.f32 %v52, %v51
    %v54 = vmul.f32 %v53, %v52
    %v55 = vmul.f32 0.5, %v54
    %v56 = vsub.f32 1.5, %v55
    %v57 = vmul.f32 %v52, %v56
    %vm58 = vweird.f32 %v51
    %vm59 = vweird.f32 %v52
    %vm60 = vmor %vm58, %vm59
    %v61 = vsel %vm60, %v52, %v57
    %v62 = vmul.f32 %v44, %v61
    %v63 = vmul.f32 %v45, %v45
    %v64 = vsel %vm47, %v63, 0.0
    %65 = vadd.xlane.f32.xlu0 %v64
    %v66 = vpop.xlane.xlu0 %65
    %v67 = vmax.f32 %v66, 1e-24
    %v68 = vrsqrt.pop %v67
    %v69 = vmul.f32 %v68, %v67
    %v70 = vmul.f32 %v69, %v68
    %v71 = vmul.f32 0.5, %v70
    %v72 = vsub.f32 1.5, %v71
    %v73 = vmul.f32 %v68, %v72
    %vm74 = vweird.f32 %v67
    %vm75 = vweird.f32 %v68
    %vm76 = vmor %vm74, %vm75
    %v77 = vsel %vm76, %v68, %v73
    %v78 = vmul.f32 %v45, %v77
    %79 = vst.msk [vmem:[#allocation7] sm:$0xff] %vm47, %v62
    %80 = vst.msk [vmem:[#allocation8] sm:$0xff] %vm47, %v78
    %v81 = vmul.f32 %v62, %v78
    %v82 = vsel %vm47, %v81, 0.0
    %83 = vadd.xlane.f32.xlu0 %v82
    %v84 = vpop.xlane.xlu0 %83
    %v85 = vsub.f32 1.0, %v84
    %vm86 = vcmask 7168
    %87 = vst.msk [vmem:[%s4] sm:$0xff] %vm86, %v85
    // Predicated region
    $region18: #{tpu_custom_call.1} parent=1 // pred_check
      _
    $region19: #{tpu_custom_call.1} parent=1 // pred_check_branch
      %89 = sbr.rel (0) target = $region21
    $region20: #{tpu_custom_call.1} parent=1 // pred_region
      %91 = vsyncadd [#allocation4], 0
      %s93 = sshll.u32 [#allocation7], 4
      %s94 = int_to_ptr.vmem [resolvable:$true] %s93
      %s95 = sshll.u32 %s2, 4
      %s96 = int_to_ptr.hbm [resolvable:$true] %s95
      %98 = dma.vmem_to_hbm [thread:$0]  %s94, 128, %s96, [#allocation4]
    $region21: #{tpu_custom_call.1} parent=1 // pred_fallthru
      _
    // Predicated region
    $region22: #{tpu_custom_call.1} parent=1 // pred_check
      _
    $region23: #{tpu_custom_call.1} parent=1 // pred_check_branch
      %100 = sbr.rel (0) target = $region25
    $region24: #{tpu_custom_call.1} parent=1 // pred_region
      %102 = vsyncadd [#allocation9], 0
      %s104 = sshll.u32 [#allocation8], 4
      %s105 = int_to_ptr.vmem [resolvable:$true] %s104
      %s106 = sshll.u32 %s3, 4
      %s107 = int_to_ptr.hbm [resolvable:$true] %s106
      %109 = dma.vmem_to_hbm [thread:$0]  %s105, 128, %s107, [#allocation9]
    $region25: #{tpu_custom_call.1} parent=1 // pred_fallthru
      _
    // Predicated region
    $region26: #{tpu_custom_call.1} parent=1 // pred_check
      _
    $region27: #{tpu_custom_call.1} parent=1 // pred_check_branch
      %111 = sbr.rel (0) target = $region29
    $region28: #{tpu_custom_call.1} parent=1 // pred_region
      _
    $region29: #{tpu_custom_call.1} parent=1 // pred_fallthru
      _
    // Predicated region
    $region30: #{tpu_custom_call.1} parent=1 // pred_check
      _
    $region31: #{tpu_custom_call.1} parent=1 // pred_check_branch
      %113 = sbr.rel (0) target = $region33
    $region32: #{tpu_custom_call.1} parent=1 // pred_region
      %115 = dma.done [#allocation4], 128
    $region33: #{tpu_custom_call.1} parent=1 // pred_fallthru
      _
    // Predicated region
    $region34: #{tpu_custom_call.1} parent=1 // pred_check
      _
    $region35: #{tpu_custom_call.1} parent=1 // pred_check_branch
      %117 = sbr.rel (0) target = $region37
    $region36: #{tpu_custom_call.1} parent=1 // pred_region
      %119 = dma.done [#allocation9], 128
    $region37: #{tpu_custom_call.1} parent=1 // pred_fallthru
      _
    // Predicated region
    $region38: #{tpu_custom_call.1} parent=1 // pred_check
      _
    $region39: #{tpu_custom_call.1} parent=1 // pred_check_branch
      %121 = sbr.rel (0) target = $region41
    $region40: #{tpu_custom_call.1} parent=1 // pred_region
      _
    $region41: #{tpu_custom_call.1} parent=1 // pred_fallthru
      _
    %122 = vsyncpa [#allocation3], 1
    %123 = vsyncpa [#allocation6], 1
    %124 = vsyncpa [#allocation4], 1
    %125 = vsyncpa [#allocation9], 1

</llo_original>
